<compile_context>
chip_gen: v5e
topology: v5e:2x2
jax: 0.10.0
libtpu: 0.0.40
codegen_flags: <defaults>
</compile_context>

<pallas_src>
import functools

import jax
import jax.numpy as jnp
from jax.experimental import pallas as pl
from jax.experimental.pallas import tpu as pltpu


def _round_up(x, m):
    return ((x + m - 1) // m) * m


def _wce_kernel(logits_ref, label_ref, sum_ref, cnt_ref, *, num_pid):
    """One row tile: log-softmax NLL + validity masking + partial reduction."""
    logits = logits_ref[...].astype(jnp.float32)   # (TN, C); f32 math even for bf16 input
    labels = label_ref[...]                        # (TN, 1) int32; >= num_pid means "ignore"
    tn, c = logits.shape

    # -log_softmax(x)[i, l] = lse_i - (x[i, l] - rowmax_i); never build full log_probs.
    row_max = jnp.max(logits, axis=1, keepdims=True)
    shifted = logits - row_max
    lse = jnp.log(jnp.sum(jnp.exp(shifted), axis=1, keepdims=True))        # (TN, 1)

    col_ids = jax.lax.broadcasted_iota(jnp.int32, (tn, c), 1)
    onehot = col_ids == labels                                             # (TN, C)
    picked = jnp.sum(jnp.where(onehot, shifted, 0.0), axis=1, keepdims=True)
    loss = lse - picked                                                    # (TN, 1)

    # Validity already folded into the label by the wrapper (ignore_index,
    # similarity threshold, random threshold, padding rows).
    valid = labels < num_pid                                               # (TN, 1)
    tile_sum = jnp.sum(jnp.where(valid, loss, 0.0))
    tile_cnt = jnp.sum(valid.astype(jnp.float32))

    # Lane-dense (1, 8, 128) partial blocks (scalar broadcast); reduced outside.
    sum_ref[...] = jnp.broadcast_to(tile_sum, sum_ref.shape)
    cnt_ref[...] = jnp.broadcast_to(tile_cnt, cnt_ref.shape)


@functools.partial(jax.jit, static_argnames=("num_pid", "row_tile"))
def weighted_cross_entropy(logits, label, max_val, eff_threshold, *, num_pid, row_tile=None):
    """logits: (N, C) f32/bf16, label: (N,) int, max_val: (num_pid,) f32."""
    n, c = logits.shape
    label = label.astype(jnp.int32)

    # Tiny wrapper-side (O(N)) gather + masking; folds the similarity-based ignore and
    # the ignore_index into a single per-row effective label (== num_pid -> invalid).
    val = max_val.astype(jnp.float32)[jnp.minimum(label, num_pid - 1)]
    sim_ignore = val > eff_threshold
    label_eff = jnp.where(sim_ignore, jnp.int32(num_pid), label)

    # Row-tile sizing: double-buffered input tile + f32 temps well inside the scoped
    # VMEM budget on every chip (v5e 16 MiB default scoped, v7x 64 MiB physical).
    itemsize = jnp.dtype(logits.dtype).itemsize
    if row_tile is None:
        vmem_budget = 24 * 1024 * 1024
        bytes_per_row = c * (2 * itemsize + 12)
        row_tile = max(8, min(512, (vmem_budget // bytes_per_row) // 8 * 8))
    tn = min(row_tile, _round_up(n, 8))
    tn = max(8, (tn // 8) * 8)
    n_pad = _round_up(n, tn)
    num_tiles = n_pad // tn

    pad = n_pad - n
    if pad:
        logits = jnp.pad(logits, ((0, pad), (0, 0)))
        label_eff = jnp.pad(label_eff, (0, pad), constant_values=num_pid)  # padded rows -> invalid
    label2d = label_eff.reshape(n_pad, 1)

    grid_spec = pltpu.PrefetchScalarGridSpec(
        num_scalar_prefetch=0,
        grid=(num_tiles,),
        in_specs=[
            pl.BlockSpec((tn, c), lambda i: (i, 0)),          # logits row tile
            pl.BlockSpec((tn, 1), lambda i: (i, 0)),          # effective labels
        ],
        out_specs=[
            pl.BlockSpec((1, 8, 128), lambda i: (i, 0, 0)),   # per-tile loss sum
            pl.BlockSpec((1, 8, 128), lambda i: (i, 0, 0)),   # per-tile valid count
        ],
    )
    cost = pl.CostEstimate(
        flops=6 * n_pad * c,
        transcendentals=n_pad * c,
        bytes_accessed=n_pad * c * itemsize + n_pad * 4,
    )
    partial_sum, partial_cnt = pl.pallas_call(
        functools.partial(_wce_kernel, num_pid=num_pid),
        out_shape=(
            jax.ShapeDtypeStruct((num_tiles, 8, 128), jnp.float32),
            jax.ShapeDtypeStruct((num_tiles, 8, 128), jnp.float32),
        ),
        grid_spec=grid_spec,
        compiler_params=pltpu.CompilerParams(
            dimension_semantics=("parallel",),          # row tiles are independent
            vmem_limit_bytes=32 * 1024 * 1024,
        ),
        cost_estimate=cost,
    )(logits, label2d)

    total = jnp.sum(partial_sum[:, 0, 0])
    n_valid = jnp.sum(partial_cnt[:, 0, 0])
    return jnp.where(n_valid > 0, total / jnp.maximum(n_valid, 1.0), total)


def _reference(logits, label, max_val, num_pid, eff_threshold):
    logp = jax.nn.log_softmax(logits, axis=1)
    idx = jnp.minimum(label, logits.shape[1] - 1)
    loss = -jnp.take_along_axis(logp, idx[:, None], axis=1)[:, 0]
    mask_labeled = label < num_pid
    val = max_val[jnp.minimum(label, num_pid - 1)]
    valid = (~(val > eff_threshold)) & mask_labeled
    loss = jnp.where(valid, loss, 0.0)
    n = jnp.sum(valid.astype(jnp.float32))
    return jnp.where(n > 0, jnp.sum(loss) / jnp.maximum(n, 1.0), jnp.sum(loss))


if __name__ == "__main__":
    key = jax.random.PRNGKey(0)
    k_lut, k_logits, k_label, k_rand = jax.random.split(key, 4)

    # Small synthetic shapes consistent with the module.
    num_pid = 96          # labeled identities (default 5532 in the module)
    feat_dim = 32         # lut feature dimension
    num_classes = 128     # labeled identities + circular queue entries
    batch = 40            # not a multiple of the row tile -> exercises padding + grid
    threshold = 0.75

    # __init__ setup (plain JAX glue): lut -> max off-diagonal similarity.
    lut = jax.random.normal(k_lut, (num_pid, feat_dim), jnp.float32)
    lut = lut / jnp.linalg.norm(lut, axis=1, keepdims=True)
    sim_mat = lut @ lut.T
    sim_mat = sim_mat - jnp.diag(jnp.diag(sim_mat))   # zero diagonal
    max_val = jnp.max(sim_mat, axis=1)                # (num_pid,)

    # Forward inputs.
    logits = jax.random.normal(k_logits, (batch, num_classes), jnp.float32)
    label = jax.random.randint(k_label, (batch,), 0, num_pid + 1, jnp.int32)  # num_pid == ignore_index

    # TODO(synk): python random.random() (rand=True branch) has no in-kernel equivalent;
    # (val > r) & (val > threshold) == val > max(r, threshold), so the random draw is
    # folded into a deterministic effective threshold computed outside the kernel.
    r = jax.random.uniform(k_rand, (), jnp.float32)
    eff_threshold = jnp.maximum(r, jnp.float32(threshold))

    out = weighted_cross_entropy(
        logits, label, max_val, eff_threshold,
        num_pid=num_pid, row_tile=16,      # small tile so the demo runs a 3-step grid
    )
    out = jax.block_until_ready(out)

    ref = _reference(logits, label, max_val, num_pid, eff_threshold)
    assert jnp.allclose(out, ref, rtol=1e-5, atol=1e-5), (out, ref)

    # bf16 logits path (HBM-bandwidth-bound case): kernel does the math in f32.
    out_bf16 = weighted_cross_entropy(
        logits.astype(jnp.bfloat16), label, max_val, eff_threshold,
        num_pid=num_pid, row_tile=16,
    )
    out_bf16 = jax.block_until_ready(out_bf16)
    assert jnp.isfinite(out_bf16)
    assert jnp.allclose(out_bf16, ref, rtol=5e-2, atol=5e-2), (out_bf16, ref)

    print("KERNEL_OK")
</pallas_src>

<mosaic_0001>
module attributes {stable_mosaic.version = 11 : i64} {
  func.func @_wce_kernel(%arg0: i32, %arg1: memref<16x128xf32, #tpu.memory_space<vmem>>, %arg2: memref<16x1xi32, #tpu.memory_space<vmem>>, %arg3: memref<1x8x128xf32, #tpu.memory_space<vmem>>, %arg4: memref<1x8x128xf32, #tpu.memory_space<vmem>>) attributes {dimension_semantics = [#tpu.dimension_semantics<parallel>], iteration_bounds = array<i64: 3>, scalar_prefetch = 0 : i64, scratch_operands = 0 : i64, tpu.core_type = #tpu.core_type<tc>, window_params = [{transform_indices = @transform_0, window_bounds = array<i64: 16, 128>}, {transform_indices = @transform_1, window_bounds = array<i64: 16, 1>}, {transform_indices = @transform_2, window_bounds = array<i64: 1, 8, 128>}, {transform_indices = @transform_3, window_bounds = array<i64: 1, 8, 128>}]} {
    %c0 = arith.constant 0 : index
    %c0_0 = arith.constant 0 : index
    %0 = vector.load %arg1[%c0, %c0_0] : memref<16x128xf32, #tpu.memory_space<vmem>>, vector<16x128xf32>
    %c0_1 = arith.constant 0 : index
    %c0_2 = arith.constant 0 : index
    %1 = vector.load %arg2[%c0_1, %c0_2] : memref<16x1xi32, #tpu.memory_space<vmem>>, vector<16x1xi32>
    %cst = arith.constant dense<0xFF800000> : vector<16xf32>
    %2 = vector.multi_reduction <maximumf>, %0, %cst [1] : vector<16x128xf32> to vector<16xf32>
    %3 = vector.shape_cast %2 : vector<16xf32> to vector<16x1xf32>
    %4 = vector.broadcast %3 : vector<16x1xf32> to vector<16x128xf32>
    %5 = arith.subf %0, %4 : vector<16x128xf32>
    %6 = math.exp %5 : vector<16x128xf32>
    %cst_3 = arith.constant dense<0.000000e+00> : vector<16xf32>
    %7 = vector.multi_reduction <add>, %6, %cst_3 [1] : vector<16x128xf32> to vector<16xf32>
    %8 = vector.shape_cast %7 : vector<16xf32> to vector<16x1xf32>
    %9 = math.log %8 : vector<16x1xf32>
    %10 = tpu.iota {dimensions = array<i32: 1>} : vector<16x128xi32>
    %11 = vector.broadcast %1 : vector<16x1xi32> to vector<16x128xi32>
    %12 = arith.cmpi eq, %10, %11 : vector<16x128xi32>
    %cst_4 = arith.constant 0.000000e+00 : f32
    %13 = vector.broadcast %cst_4 : f32 to vector<16x128xf32>
    %14 = arith.select %12, %5, %13 : vector<16x128xi1>, vector<16x128xf32>
    %cst_5 = arith.constant dense<0.000000e+00> : vector<16xf32>
    %15 = vector.multi_reduction <add>, %14, %cst_5 [1] : vector<16x128xf32> to vector<16xf32>
    %16 = vector.shape_cast %15 : vector<16xf32> to vector<16x1xf32>
    %17 = arith.subf %9, %16 : vector<16x1xf32>
    %c96_i32 = arith.constant 96 : i32
    %18 = vector.broadcast %c96_i32 : i32 to vector<16x1xi32>
    %19 = arith.cmpi slt, %1, %18 : vector<16x1xi32>
    %cst_6 = arith.constant 0.000000e+00 : f32
    %20 = vector.broadcast %cst_6 : f32 to vector<16x1xf32>
    %21 = arith.select %19, %17, %20 : vector<16x1xi1>, vector<16x1xf32>
    %22 = vector.shape_cast %21 : vector<16x1xf32> to vector<1x16x1xf32>
    %cst_7 = arith.constant dense<0.000000e+00> : vector<1xf32>
    %23 = vector.multi_reduction <add>, %22, %cst_7 [1, 2] : vector<1x16x1xf32> to vector<1xf32>
    %24 = vector.shape_cast %23 : vector<1xf32> to vector<1x1x1xf32>
    %25 = vector.extract %24[0, 0, 0] : f32 from vector<1x1x1xf32>
    %26 = arith.extui %19 : vector<16x1xi1> to vector<16x1xi32>
    %27 = arith.sitofp %26 : vector<16x1xi32> to vector<16x1xf32>
    %28 = vector.shape_cast %27 : vector<16x1xf32> to vector<1x16x1xf32>
    %cst_8 = arith.constant dense<0.000000e+00> : vector<1xf32>
    %29 = vector.multi_reduction <add>, %28, %cst_8 [1, 2] : vector<1x16x1xf32> to vector<1xf32>
    %30 = vector.shape_cast %29 : vector<1xf32> to vector<1x1x1xf32>
    %31 = vector.extract %30[0, 0, 0] : f32 from vector<1x1x1xf32>
    %32 = vector.broadcast %25 : f32 to vector<1x8x128xf32>
    %c0_9 = arith.constant 0 : index
    %c0_10 = arith.constant 0 : index
    %c0_11 = arith.constant 0 : index
    %33 = vector.load %arg3[%c0_9, %c0_10, %c0_11] : memref<1x8x128xf32, #tpu.memory_space<vmem>>, vector<1x8x128xf32>
    tpu.vector_store %arg3[%c0_9, %c0_10, %c0_11], %32 {strides = array<i32>} : memref<1x8x128xf32, #tpu.memory_space<vmem>>, vector<1x8x128xf32>,
    %34 = vector.broadcast %31 : f32 to vector<1x8x128xf32>
    %c0_12 = arith.constant 0 : index
    %c0_13 = arith.constant 0 : index
    %c0_14 = arith.constant 0 : index
    %35 = vector.load %arg4[%c0_12, %c0_13, %c0_14] : memref<1x8x128xf32, #tpu.memory_space<vmem>>, vector<1x8x128xf32>
    tpu.vector_store %arg4[%c0_12, %c0_13, %c0_14], %34 {strides = array<i32>} : memref<1x8x128xf32, #tpu.memory_space<vmem>>, vector<1x8x128xf32>,
    return
  }
  func.func @transform_0(%arg0: i32) -> (i32, i32) {
    %c0_i32 = arith.constant 0 : i32
    %c0_i32_0 = arith.constant 0 : i32
    return %arg0, %c0_i32 : i32, i32
  }
  func.func @transform_1(%arg0: i32) -> (i32, i32) {
    %c0_i32 = arith.constant 0 : i32
    %c0_i32_0 = arith.constant 0 : i32
    return %arg0, %c0_i32 : i32, i32
  }
  func.func @transform_2(%arg0: i32) -> (i32, i32, i32) {
    %c0_i32 = arith.constant 0 : i32
    %c0_i32_0 = arith.constant 0 : i32
    %c0_i32_1 = arith.constant 0 : i32
    return %arg0, %c0_i32, %c0_i32_0 : i32, i32, i32
  }
  func.func @transform_3(%arg0: i32) -> (i32, i32, i32) {
    %c0_i32 = arith.constant 0 : i32
    %c0_i32_0 = arith.constant 0 : i32
    %c0_i32_1 = arith.constant 0 : i32
    return %arg0, %c0_i32, %c0_i32_0 : i32, i32, i32
  }
}

</mosaic_0001>

<llo_original>
// kernel: weighted_cross_entropy.1
$region0: #{weighted_cross_entropy.1}
  #allocation0 [shape = 'u32[]', space=smem, size = 0x4, offset = 0x4, fixed_abs, tag = 'smem constant byte address 0x4 - core index']
  #allocation1 [shape = 'u32[72,128]{1,0:T(1,128)}', space=vmem, size = 0x9000, scoped, tag = 'internal scratch']
  %s0 = inlined_call_operand.vmem [shape: f32[48,128], index: 0, kind: input, shape index: {}]
  %s1 = inlined_call_operand.vmem [shape: s32[48,1], index: 1, kind: input, shape index: {}]
  %s2 = inlined_call_operand.vmem [shape: f32[3,8,128], index: 2, kind: output, shape index: {0}]
  %s3 = inlined_call_operand.vmem [shape: f32[3,8,128], index: 3, kind: output, shape index: {1}]
  %4 = xla_tuple %s2, %s3
  %s5 = sld [smem:[#allocation0]]
  $region49: #{weighted_cross_entropy.1} parent=0
    _
  %s7 = ssub.s32 1, %s5
  %s8 = scalar_select 0, %s7, %s5
  loop: start=0, step=1, limit=5
  $region2: #{weighted_cross_entropy.1} parent=0 // loop_pre_header
    _
  $region3: #{weighted_cross_entropy.1} parent=0 // loop_header
    %s10 = sphi 0, %s14
    %p11 = scmp.ge.s32.totalorder %s10, 5
    %s20 = sphi 0, %s22
    %s23 = sphi 0, %s20
    %s24 = sphi 0, %s23
    %s40 = sphi 0, %s24
    %s46 = sphi 0, %s48
    %s49 = sphi 0, %s46
    %s50 = sphi 0, %s49
    %s66 = sphi 0, %s50
    %s72 = sphi 0, %s74
    %s75 = sphi 0, %s72
    %s76 = sphi 0, %s75
    %s92 = sphi 0, %s76
    %s98 = sphi 0, %s100
    %s101 = sphi 0, %s98
    %s102 = sphi 0, %s101
    %s118 = sphi 0, %s102
  $region4: #{weighted_cross_entropy.1} parent=0 // loop_header_branch
    %13 = sbr.rel (%p11) target = $region8
  $region5: #{weighted_cross_entropy.1} parent=0 // loop_body
    %s15 = ssub.s32 %s10, 1
    %s16 = ssub.s32 %s10, 2
    %s17 = sadd.s32 %s10, 1
    %s18 = ssub.s32 %s10, %s17
    %p19 = scmp.eq.s32.totalorder %s18, 0
    %s21 = sadd.s32 %s20, 1
    %s22 = scalar_select %p19, %s20, %s21
    %p25 = pneg %p19
    %p26 = scmp.eq.s32.totalorder %s10, 2
    %p27 = por %p25, %p26
    %p28 = scmp.ne.s32.totalorder %s20, %s23
    %p29 = scmp.eq.s32.totalorder %s10, 0
    %p30 = por %p28, %p29
    %p31 = scmp.ne.s32.totalorder %s20, %s23
    %p32 = scmp.eq.s32.totalorder %s15, 2
    %p33 = por %p31, %p32
    %p34 = scmp.ne.s32.totalorder %s23, %s24
    %p35 = scmp.eq.s32.totalorder %s15, 0
    %p36 = por %p34, %p35
    %p37 = scmp.ne.s32.totalorder %s23, %s24
    %p38 = scmp.eq.s32.totalorder %s16, 2
    %p39 = por %p37, %p38
    %p41 = scmp.ne.s32.totalorder %s24, %s40
    %p42 = scmp.eq.s32.totalorder %s16, 0
    %p43 = por %p41, %p42
    %s44 = ssub.s32 %s10, %s17
    %p45 = scmp.eq.s32.totalorder %s44, 0
    %s47 = sadd.s32 %s46, 1
    %s48 = scalar_select %p45, %s46, %s47
    %p51 = pneg %p45
    %p52 = scmp.eq.s32.totalorder %s10, 2
    %p53 = por %p51, %p52
    %p54 = scmp.ne.s32.totalorder %s46, %s49
    %p55 = scmp.eq.s32.totalorder %s10, 0
    %p56 = por %p54, %p55
    %p57 = scmp.ne.s32.totalorder %s46, %s49
    %p58 = scmp.eq.s32.totalorder %s15, 2
    %p59 = por %p57, %p58
    %p60 = scmp.ne.s32.totalorder %s49, %s50
    %p61 = scmp.eq.s32.totalorder %s15, 0
    %p62 = por %p60, %p61
    %p63 = scmp.ne.s32.totalorder %s49, %s50
    %p64 = scmp.eq.s32.totalorder %s16, 2
    %p65 = por %p63, %p64
    %p67 = scmp.ne.s32.totalorder %s50, %s66
    %p68 = scmp.eq.s32.totalorder %s16, 0
    %p69 = por %p67, %p68
    %s70 = ssub.s32 %s10, %s17
    %p71 = scmp.eq.s32.totalorder %s70, 0
    %s73 = sadd.s32 %s72, 1
    %s74 = scalar_select %p71, %s72, %s73
    %p77 = pneg %p71
    %p78 = scmp.eq.s32.totalorder %s10, 2
    %p79 = por %p77, %p78
    %p80 = scmp.ne.s32.totalorder %s72, %s75
    %p81 = scmp.eq.s32.totalorder %s10, 0
    %p82 = por %p80, %p81
    %p83 = scmp.ne.s32.totalorder %s72, %s75
    %p84 = scmp.eq.s32.totalorder %s15, 2
    %p85 = por %p83, %p84
    %p86 = scmp.ne.s32.totalorder %s75, %s76
    %p87 = scmp.eq.s32.totalorder %s15, 0
    %p88 = por %p86, %p87
    %p89 = scmp.ne.s32.totalorder %s75, %s76
    %p90 = scmp.eq.s32.totalorder %s16, 2
    %p91 = por %p89, %p90
    %p93 = scmp.ne.s32.totalorder %s76, %s92
    %p94 = scmp.eq.s32.totalorder %s16, 0
    %p95 = por %p93, %p94
    %s96 = ssub.s32 %s10, %s17
    %p97 = scmp.eq.s32.totalorder %s96, 0
    %s99 = sadd.s32 %s98, 1
    %s100 = scalar_select %p97, %s98, %s99
    %p103 = pneg %p97
    %p104 = scmp.eq.s32.totalorder %s10, 2
    %p105 = por %p103, %p104
    %p106 = scmp.ne.s32.totalorder %s98, %s101
    %p107 = scmp.eq.s32.totalorder %s10, 0
    %p108 = por %p106, %p107
    %p109 = scmp.ne.s32.totalorder %s98, %s101
    %p110 = scmp.eq.s32.totalorder %s15, 2
    %p111 = por %p109, %p110
    %p112 = scmp.ne.s32.totalorder %s101, %s102
    %p113 = scmp.eq.s32.totalorder %s15, 0
    %p114 = por %p112, %p113
    %p115 = scmp.ne.s32.totalorder %s101, %s102
    %p116 = scmp.eq.s32.totalorder %s16, 2
    %p117 = por %p115, %p116
    %p119 = scmp.ne.s32.totalorder %s102, %s118
    %p120 = scmp.eq.s32.totalorder %s16, 0
    %p121 = por %p119, %p120
    %p122 = scmp.le.s32.totalorder 1, %s10
    %p123 = scmp.lt.s32.totalorder %s10, 4
    %p124 = pnand %p122, %p123
    %p125 = pneg %p124
    // Predicated region
    $region9: #{weighted_cross_entropy.1} parent=5 // pred_check
      _
    $region10: #{weighted_cross_entropy.1} parent=5 // pred_check_branch
      %127 = sbr.rel (%p124) target = $region12
    $region11: #{weighted_cross_entropy.1} parent=5 // pred_region
      %s128 = ssub.s32 %s10, 1
    $region12: #{weighted_cross_entropy.1} parent=5 // pred_fallthru
      _
    %p129 = scmp.lt.s32.totalorder %s10, 3
    // Predicated region
    $region13: #{weighted_cross_entropy.1} parent=5 // pred_check
      %p130 = pneg %p129
    $region14: #{weighted_cross_entropy.1} parent=5 // pred_check_branch
      %132 = sbr.rel (%p130) target = $region16
    $region15: #{weighted_cross_entropy.1} parent=5 // pred_region
      // Predicated region
      $region17: #{weighted_cross_entropy.1} parent=15 // pred_check
        %p133 = pneg %p30
      $region18: #{weighted_cross_entropy.1} parent=15 // pred_check_branch
        %135 = sbr.rel (%p133) target = $region20
      $region19: #{weighted_cross_entropy.1} parent=15 // pred_region
        %s136 = smul.u32 2, %s10
        %p137 = scmp.lt.s32.totalorder %s136, 5
        %s138 = scalar_select %p137, %s136, 5
        %s139 = smul.addr %s138, 8
        %s140 = scalar_lea.vmem %s0, %s139
        %s141 = smul.u32 2, %s10
      $region20: #{weighted_cross_entropy.1} parent=15 // pred_fallthru
        _
      // Predicated region
      $region21: #{weighted_cross_entropy.1} parent=15 // pred_check
        %p142 = pneg %p56
      $region22: #{weighted_cross_entropy.1} parent=15 // pred_check_branch
        %144 = sbr.rel (%p142) target = $region24
      $region23: #{weighted_cross_entropy.1} parent=15 // pred_region
        %s145 = smul.u32 2, %s10
        %p146 = scmp.lt.s32.totalorder %s145, 5
        %s147 = scalar_select %p146, %s145, 5
        %s148 = smul.addr %s147, 8
        %s149 = scalar_lea.vmem %s1, %s148
        %s150 = smul.u32 2, %s10
      $region24: #{weighted_cross_entropy.1} parent=15 // pred_fallthru
        _
    $region16: #{weighted_cross_entropy.1} parent=5 // pred_fallthru
      _
    %p151 = scmp.le.s32.totalorder 1, %s10
    %p152 = scmp.lt.s32.totalorder %s10, 4
    %p153 = pnand %p151, %p152
    %p154 = pneg %p153
    // Predicated region
    $region25: #{weighted_cross_entropy.1} parent=5 // pred_check
      _
    $region26: #{weighted_cross_entropy.1} parent=5 // pred_check_branch
      %156 = sbr.rel (%p153) target = $region28
    $region27: #{weighted_cross_entropy.1} parent=5 // pred_region
      %s157 = ssub.s32 %s10, 1
      %s158 = smul.u32 2, %s15
      %p159 = scmp.lt.s32.totalorder %s158, 5
      %s160 = scalar_select %p159, %s158, 5
      %s161 = smul.addr %s160, 8
      %s162 = scalar_lea.vmem %s0, %s161
      %p163 = pneg %p36
      %p164 = pneg %p33
      %s165 = smul.u32 2, %s15
      %p166 = scmp.lt.s32.totalorder %s165, 5
      %s167 = scalar_select %p166, %s165, 5
      %s168 = smul.addr %s167, 8
      %s169 = scalar_lea.vmem %s1, %s168
      %p170 = pneg %p62
      %p171 = pneg %p59
      %p172 = pneg %p88
      %p173 = pneg %p85
      %p174 = scmp.lt.s32.totalorder %s15, 2
      %s175 = scalar_select %p174, %s15, 2
      %s176 = smul.addr %s175, 8
      %s177 = scalar_lea.vmem %s2, %s176
      %p178 = pneg %p114
      %p179 = pneg %p111
      %p180 = scmp.lt.s32.totalorder %s15, 2
      %s181 = scalar_select %p180, %s15, 2
      %s182 = smul.addr %s181, 8
      %s183 = scalar_lea.vmem %s3, %s182
      %s184 = smul.u32 2, %s15
      %p185 = scmp.lt.s32.totalorder %s184, 5
      %s186 = scalar_select %p185, %s184, 5
      %s187 = smul.addr %s186, 8
      %s188 = scalar_lea.vmem %s0, %s187
      %s189 = smul.u32 2, %s15
      %s190 = smul.u32 2, %s15
      %p191 = scmp.lt.s32.totalorder %s190, 5
      %s192 = scalar_select %p191, %s190, 5
      %s193 = smul.addr %s192, 8
      %s194 = scalar_lea.vmem %s1, %s193
      %s195 = smul.u32 2, %s15
      %p196 = scmp.lt.s32.totalorder %s15, 2
      %s197 = scalar_select %p196, %s15, 2
      %s198 = smul.addr %s197, 8
      %s199 = scalar_lea.vmem %s2, %s198
      %p200 = scmp.lt.s32.totalorder %s15, 2
      %s201 = scalar_select %p200, %s15, 2
      %s202 = smul.addr %s201, 8
      %s203 = scalar_lea.vmem %s3, %s202
      %v204 = vld [vmem:[%s188] sm:$0xff]
      %v205 = vld [vmem:[%s188 + $0x8] sm:$0xff]
      %v206 = vld [vmem:[%s194] sm:$0xff]
      %v207 = vld [vmem:[%s194 + $0x8] sm:$0xff]
      %208 = vmax.xlane.f32.xlu0 %v204
      %v209 = vpop.xlane.xlu0 %208
      %210 = vmax.xlane.f32.xlu0 %v205
      %v211 = vpop.xlane.xlu0 %210
      %v212 = vsub.f32 %v204, %v209
      %v213 = vsub.f32 %v205, %v211
      %v214 = vmul.f32 %v212, 1.442695
      %v215 = vpow.pop %v214
      %v216 = vmul.f32 %v213, 1.442695
      %v217 = vpow.pop %v216
      %218 = vadd.xlane.f32.xlu0 %v215
      %v219 = vpop.xlane.xlu0 %218
      %220 = vadd.xlane.f32.xlu0 %v217
      %v221 = vpop.xlane.xlu0 %220
      %v222 = vlog2.pop %v219
      %v223 = vmul.f32 %v222, 0.6931472
      %v224 = vlog2.pop %v221
      %v225 = vmul.f32 %v224, 0.6931472
      %v226 = vlaneseq
      %v227 = vand.u32 %v226, 127
      %228 = vset.pattern.permute.xlu0 0
      %229 = vperm.xlu0 %228, %v206
      %v230 = vpop.permute.xlu0 %229
      %231 = vset.pattern.permute.xlu0 0
      %232 = vperm.xlu0 %231, %v207
      %v233 = vpop.permute.xlu0 %232
      %vm234 = vcmp.eq.s32.totalorder %v227, %v230
      %vm235 = vcmp.eq.s32.totalorder %v227, %v233
      %v236 = vsel %vm234, %v212, 0.0
      %v237 = vsel %vm235, %v213, 0.0
      %238 = vadd.xlane.f32.xlu0 %v236
      %v239 = vpop.xlane.xlu0 %238
      %240 = vadd.xlane.f32.xlu0 %v237
      %v241 = vpop.xlane.xlu0 %240
      %v242 = vsub.f32 %v223, %v239
      %v243 = vsub.f32 %v225, %v241
      %vm244 = vcmp.lt.s32.totalorder %v206, 96
      %vm245 = vcmp.lt.s32.totalorder %v207, 96
      %v246 = vsel %vm244, %v242, 0.0
      %v247 = vsel %vm245, %v243, 0.0
      %vm248 = vcmask 7168
      %v249 = vsel %vm248, %v246, 0.0
      %v250 = vsel %vm248, %v247, 0.0
      %v251 = vadd.f32 %v249, %v250
      %252 = vadd.xlane.f32.xlu0 %v251
      %v253 = vpop.xlane.xlu0 %252
      %v254 = vrot.slane %v253, 4
      %v255 = vadd.f32 %v253, %v254
      %v256 = vrot.slane %v255, 2
      %v257 = vadd.f32 %v255, %v256
      %v258 = vrot.slane %v257, 1
      %v259 = vadd.f32 %v257, %v258
      %s260 = vtos %v259
      %v261 = vsel %vm244, 1, 0
      %v262 = vsel %vm245, 1, 0
      %v263 = vcvt.s32.f32 %v261
      %v264 = vcvt.s32.f32 %v262
      %v265 = vsel %vm248, %v263, 0.0
      %v266 = vsel %vm248, %v264, 0.0
      %v267 = vadd.f32 %v265, %v266
      %268 = vadd.xlane.f32.xlu0 %v267
      %v269 = vpop.xlane.xlu0 %268
      %v270 = vrot.slane %v269, 4
      %v271 = vadd.f32 %v269, %v270
      %v272 = vrot.slane %v271, 2
      %v273 = vadd.f32 %v271, %v272
      %v274 = vrot.slane %v273, 1
      %v275 = vadd.f32 %v273, %v274
      %s276 = vtos %v275
      %v277 = vstv %s260
      %278 = vst [vmem:[%s199] sm:$0xff] %v277
      %v279 = vstv %s276
      %280 = vst [vmem:[%s203] sm:$0xff] %v279
      %p281 = scmp.lt.s32.totalorder %s15, 2
      %s282 = scalar_select %p281, %s15, 2
      %s283 = smul.addr %s282, 8
      %s284 = scalar_lea.vmem %s2, %s283
      %p285 = scmp.lt.s32.totalorder %s15, 2
      %s286 = scalar_select %p285, %s15, 2
      %s287 = smul.addr %s286, 8
      %s288 = scalar_lea.vmem %s3, %s287
      // Predicated region
      $region29: #{weighted_cross_entropy.1} parent=27 // pred_check
        %p289 = pneg %p85
      $region30: #{weighted_cross_entropy.1} parent=27 // pred_check_branch
        %291 = sbr.rel (%p289) target = $region32
      $region31: #{weighted_cross_entropy.1} parent=27 // pred_region
        _
      $region32: #{weighted_cross_entropy.1} parent=27 // pred_fallthru
        _
      // Predicated region
      $region33: #{weighted_cross_entropy.1} parent=27 // pred_check
        %p292 = pneg %p111
      $region34: #{weighted_cross_entropy.1} parent=27 // pred_check_branch
        %294 = sbr.rel (%p292) target = $region36
      $region35: #{weighted_cross_entropy.1} parent=27 // pred_region
        _
      $region36: #{weighted_cross_entropy.1} parent=27 // pred_fallthru
        _
    $region28: #{weighted_cross_entropy.1} parent=5 // pred_fallthru
      _
    %p295 = scmp.le.s32.totalorder 2, %s10
    // Predicated region
    $region37: #{weighted_cross_entropy.1} parent=5 // pred_check
      %p296 = pneg %p295
    $region38: #{weighted_cross_entropy.1} parent=5 // pred_check_branch
      %298 = sbr.rel (%p296) target = $region40
    $region39: #{weighted_cross_entropy.1} parent=5 // pred_region
      %s299 = ssub.s32 %s10, 2
      // Predicated region
      $region41: #{weighted_cross_entropy.1} parent=39 // pred_check
        %p300 = pneg %p91
      $region42: #{weighted_cross_entropy.1} parent=39 // pred_check_branch
        %302 = sbr.rel (%p300) target = $region44
      $region43: #{weighted_cross_entropy.1} parent=39 // pred_region
        %p303 = scmp.lt.s32.totalorder %s16, 2
        %s304 = scalar_select %p303, %s16, 2
        %s305 = smul.addr %s304, 8
        %s306 = scalar_lea.vmem %s2, %s305
      $region44: #{weighted_cross_entropy.1} parent=39 // pred_fallthru
        _
      // Predicated region
      $region45: #{weighted_cross_entropy.1} parent=39 // pred_check
        %p307 = pneg %p117
      $region46: #{weighted_cross_entropy.1} parent=39 // pred_check_branch
        %309 = sbr.rel (%p307) target = $region48
      $region47: #{weighted_cross_entropy.1} parent=39 // pred_region
        %p310 = scmp.lt.s32.totalorder %s16, 2
        %s311 = scalar_select %p310, %s16, 2
        %s312 = smul.addr %s311, 8
        %s313 = scalar_lea.vmem %s3, %s312
      $region48: #{weighted_cross_entropy.1} parent=39 // pred_fallthru
        _
    $region40: #{weighted_cross_entropy.1} parent=5 // pred_fallthru
      _
  $region6: #{weighted_cross_entropy.1} parent=0 // loop_footer
    %s14 = sadd.s32 1, %s10
  $region7: #{weighted_cross_entropy.1} parent=0 // loop_footer_branch
    %9 = sbr.rel target = $region3
  $region8: #{weighted_cross_entropy.1} parent=0 // loop_exit
    _

</llo_original>
